<compile_context>
chip_gen: v6e
topology: v6e:2x2x1
jax: 0.10.0
libtpu: 0.0.40
codegen_flags: <defaults>
</compile_context>

<pallas_src>
import math

import jax
import jax.numpy as jnp
from jax.experimental import pallas as pl
from jax.experimental.pallas import tpu as pltpu

_ROW_ALIGN = 32                       # sublane-pack safe for f32/bf16/int8/fp8
_TILE_BYTES_TARGET = 4 * 1024 * 1024  # ~4 MiB input block per grid step


def _attenuator_kernel(x_ref, f_ref, out_ref):
    # x_ref/out_ref: (TR, W) VMEM tile; f_ref: (1, W) resident broadcast row.
    out_ref[...] = x_ref[...] * f_ref[...]


def _round_down(v, m):
    return max(m, (v // m) * m)


def attenuator_forward(x, factors):
    """out = x * factors, broadcasting over the last axis."""
    orig_shape = x.shape
    dim = orig_shape[-1]
    assert factors.shape == (dim,)
    assert jnp.issubdtype(x.dtype, jnp.floating), "Attenuator expects float input"

    total_rows = x.size // dim

    # --- Lane-dense folding (generalized) --------------------------------
    # Smallest rep such that width = dim * rep is a multiple of 128.
    rep_full = 128 // math.gcd(dim, 128)
    rep = 1
    if rep_full > 1 and total_rows % rep_full == 0:
        rep = rep_full
    # TODO(synk): when total_rows % rep_full != 0, row-padding could recover
    # lane-dense stores; falling back to rep=1 keeps the kernel copy-free.
    width = dim * rep
    rows2 = total_rows // rep

    x2d = x.reshape(rows2, width)
    # Resident factor row, replicated along the folded width, in x.dtype so
    # the multiply runs natively on the VPU (no per-element casts).
    f_row = jnp.tile(factors.astype(x.dtype), rep).reshape(1, width)

    # --- Row tiling --------------------------------------------------------
    itemsize = jnp.dtype(x.dtype).itemsize
    tr_target = _round_down(
        max(_ROW_ALIGN, _TILE_BYTES_TARGET // (width * itemsize)), _ROW_ALIGN
    )

    if rows2 <= tr_target:
        # Small/medium input: one block, unless there's enough work to split
        # across both v7x TensorCores (>= 2 grid steps of >= 32 rows each).
        if rows2 >= 4 * _ROW_ALIGN:
            TR = _round_down(pl.cdiv(rows2, 2), _ROW_ALIGN)
        else:
            TR = rows2  # equals full array dim -> satisfies (8,128) rule
    else:
        TR = tr_target

    grid = (pl.cdiv(rows2, TR),)

    out2d = pl.pallas_call(
        _attenuator_kernel,
        out_shape=jax.ShapeDtypeStruct((rows2, width), x.dtype),
        grid=grid,
        in_specs=[
            pl.BlockSpec((TR, width), lambda i: (i, 0)),   # x tile, streamed
            pl.BlockSpec((1, width), lambda i: (0, 0)),    # factors, resident
        ],
        out_specs=pl.BlockSpec((TR, width), lambda i: (i, 0)),
        compiler_params=pltpu.CompilerParams(
            dimension_semantics=("parallel",),
            vmem_limit_bytes=40 << 20,
        ),
        cost_estimate=pl.CostEstimate(
            flops=rows2 * width,
            transcendentals=0,
            bytes_accessed=2 * rows2 * width * itemsize + width * itemsize,
        ),
    )(x2d, f_row)

    return out2d.reshape(orig_shape)


if __name__ == "__main__":
    key = jax.random.PRNGKey(0)

    batch, seq, dim = 2, 8, 32
    factor_init = 0.8

    # Deterministic parameter init, matching Attenuator.__init__
    factors = factor_init * jnp.ones((dim,), dtype=jnp.float32)

    x = jax.random.normal(key, (batch, seq, dim), dtype=jnp.float32)

    out = attenuator_forward(x, factors)
    out = jax.block_until_ready(out)

    # Reference check (plain JAX) against the kernel output.
    ref = x * factors
    assert out.shape == x.shape
    assert jnp.allclose(out, ref, atol=1e-6), "mismatch vs reference"

    print("KERNEL_OK")
</pallas_src>

<mosaic_0001>
module attributes {stable_mosaic.version = 11 : i64} {
  func.func @_attenuator_kernel(%arg0: i32, %arg1: memref<4x128xf32, #tpu.memory_space<vmem>>, %arg2: memref<1x128xf32, #tpu.memory_space<vmem>>, %arg3: memref<4x128xf32, #tpu.memory_space<vmem>>) attributes {dimension_semantics = [#tpu.dimension_semantics<parallel>], iteration_bounds = array<i64: 1>, scalar_prefetch = 0 : i64, scratch_operands = 0 : i64, tpu.core_type = #tpu.core_type<tc>, window_params = [{transform_indices = @transform_0, window_bounds = array<i64: 4, 128>}, {pipeline_mode = #tpu.pipeline_mode<synchronous>, transform_indices = @transform_1, window_bounds = array<i64: 1, 128>}, {transform_indices = @transform_2, window_bounds = array<i64: 4, 128>}]} {
    %c0 = arith.constant 0 : index
    %c0_0 = arith.constant 0 : index
    %0 = vector.load %arg1[%c0, %c0_0] : memref<4x128xf32, #tpu.memory_space<vmem>>, vector<4x128xf32>
    %c0_1 = arith.constant 0 : index
    %c0_2 = arith.constant 0 : index
    %1 = vector.load %arg2[%c0_1, %c0_2] : memref<1x128xf32, #tpu.memory_space<vmem>>, vector<1x128xf32>
    %2 = vector.broadcast %1 : vector<1x128xf32> to vector<4x128xf32>
    %3 = arith.mulf %0, %2 : vector<4x128xf32>
    %c0_3 = arith.constant 0 : index
    %c0_4 = arith.constant 0 : index
    %4 = vector.load %arg3[%c0_3, %c0_4] : memref<4x128xf32, #tpu.memory_space<vmem>>, vector<4x128xf32>
    tpu.vector_store %arg3[%c0_3, %c0_4], %3 {strides = array<i32>} : memref<4x128xf32, #tpu.memory_space<vmem>>, vector<4x128xf32>,
    return
  }
  func.func @transform_0(%arg0: i32) -> (i32, i32) {
    %c0_i32 = arith.constant 0 : i32
    %c0_i32_0 = arith.constant 0 : i32
    return %arg0, %c0_i32 : i32, i32
  }
  func.func @transform_1(%arg0: i32) -> (i32, i32) {
    %c0_i32 = arith.constant 0 : i32
    %c0_i32_0 = arith.constant 0 : i32
    %c0_i32_1 = arith.constant 0 : i32
    return %c0_i32, %c0_i32_0 : i32, i32
  }
  func.func @transform_2(%arg0: i32) -> (i32, i32) {
    %c0_i32 = arith.constant 0 : i32
    %c0_i32_0 = arith.constant 0 : i32
    return %arg0, %c0_i32 : i32, i32
  }
}

</mosaic_0001>

<llo_original>
// kernel: tpu_custom_call.1
$region0: #{tpu_custom_call.1}
  #allocation0 [shape = 'u32[]', space=smem, size = 0x4, offset = 0x4, fixed_abs, tag = 'smem constant byte address 0x4 - core index']
  #allocation1 [shape = 'u32[144,128]{1,0:T(1,128)}', space=vmem, size = 0x12000, scoped, tag = 'internal scratch']
  %s0 = inlined_call_operand.hbm [shape: f32[4,128], index: 0, kind: input, shape index: {}]
  %s1 = inlined_call_operand.vmem [shape: f32[1,128], index: 1, kind: input, shape index: {}]
  %s2 = inlined_call_operand.hbm [shape: f32[4,128], index: 2, kind: output, shape index: {}]
  %s3 = sld [smem:[#allocation0]]
  $region22: #{tpu_custom_call.1} parent=0
    _
  %s5 = ssub.s32 1, %s3
  %s6 = scalar_select 0, %s5, %s3
  $region1: #{tpu_custom_call.1} parent=0
    #allocation2 [shape = 'u8[2048]{0}', space=vmem, size = 0x800, scoped, tag = 'input window, operand 0, single buffered']
    #allocation3 [shape = 's32[1]{0}', space=sflag, size = 0x4, scoped, tag = 'scoped memory for tpu_custom_call.1']
    #allocation4 [shape = 's32[1]{0}', space=sflag, size = 0x4, scoped, tag = 'scoped memory for tpu_custom_call.1']
    #allocation5 [shape = 'u8[2048]{0}', space=vmem, size = 0x800, scoped, tag = 'output window, operand 0, single buffered']
    %7 = vsyncpa [#allocation3], 0
    %8 = vsyncpa [#allocation4], 0
    // Predicated region
    $region2: #{tpu_custom_call.1} parent=1 // pred_check
      _
    $region3: #{tpu_custom_call.1} parent=1 // pred_check_branch
      %10 = sbr.rel (0) target = $region5
    $region4: #{tpu_custom_call.1} parent=1 // pred_region
      %s12 = ssub.s32 64, 64
      %13 = vsyncadd [#allocation3], %s12
      %s15 = sshll.u32 [#allocation2], 4
      %s16 = int_to_ptr.vmem [resolvable:$true] %s15
      %18 = dma.hbm_to_vmem [thread:$0]  %s0, 64, %s16, [#allocation3]
    $region5: #{tpu_custom_call.1} parent=1 // pred_fallthru
      _
    // Predicated region
    $region6: #{tpu_custom_call.1} parent=1 // pred_check
      _
    $region7: #{tpu_custom_call.1} parent=1 // pred_check_branch
      %20 = sbr.rel (0) target = $region9
    $region8: #{tpu_custom_call.1} parent=1 // pred_region
      _
    $region9: #{tpu_custom_call.1} parent=1 // pred_fallthru
      _
    // Predicated region
    $region10: #{tpu_custom_call.1} parent=1 // pred_check
      _
    $region11: #{tpu_custom_call.1} parent=1 // pred_check_branch
      %22 = sbr.rel (0) target = $region13
    $region12: #{tpu_custom_call.1} parent=1 // pred_region
      %23 = dma.done [#allocation3], 64
    $region13: #{tpu_custom_call.1} parent=1 // pred_fallthru
      _
    %v24 = vld [vmem:[#allocation2] sm:$0xf]
    %v25 = vld [vmem:[%s1] sm:$0x1]
    %v27 = vlaneseq
    %v28 = vshrl.u32 %v27, 7
    %v29 = vsub.s32 0, %v28
    %v30 = vrot.slane %v25, %v29
    %v32 = vmul.f32 %v24, %v30
    %33 = vst [vmem:[#allocation5] sm:$0xf] %v32
    // Predicated region
    $region14: #{tpu_custom_call.1} parent=1 // pred_check
      _
    $region15: #{tpu_custom_call.1} parent=1 // pred_check_branch
      %35 = sbr.rel (0) target = $region17
    $region16: #{tpu_custom_call.1} parent=1 // pred_region
      %s37 = ssub.s32 64, 64
      %38 = vsyncadd [#allocation4], %s37
      %s40 = sshll.u32 [#allocation5], 4
      %s41 = int_to_ptr.vmem [resolvable:$true] %s40
      %43 = dma.vmem_to_hbm [thread:$0]  %s41, 64, %s2, [#allocation4]
    $region17: #{tpu_custom_call.1} parent=1 // pred_fallthru
      _
    // Predicated region
    $region18: #{tpu_custom_call.1} parent=1 // pred_check
      _
    $region19: #{tpu_custom_call.1} parent=1 // pred_check_branch
      %45 = sbr.rel (0) target = $region21
    $region20: #{tpu_custom_call.1} parent=1 // pred_region
      %46 = dma.done [#allocation4], 64
    $region21: #{tpu_custom_call.1} parent=1 // pred_fallthru
      _
    %47 = vsyncpa [#allocation3], 1
    %48 = vsyncpa [#allocation4], 1

</llo_original>
